<compile_context>
chip_gen: v7x
topology: tpu7x:2x2x1
jax: 0.10.0
libtpu: 0.0.40
codegen_flags: <defaults>
</compile_context>

<pallas_src>
import jax
import jax.numpy as jnp
import numpy as np
from jax import lax
from jax.experimental import pallas as pl
from jax.experimental.pallas import tpu as pltpu


# contract last dims of both operands: (1, D) x (tm, D)^T -> (1, tm)
_TRANS_B_DIM_NUMBERS = (((1,), (1,)), ((), ()))


# ------------------------------- Pallas kernel ------------------------------ #

def _prior_disc_kernel(x_ref, w0_ref, b0_ref, w1_ref, b1_ref, w2_ref, b2_ref,
                       o_ref):
    # Layer 0: relu(x @ W0 + b0).  x / W0 arrive pre-cast to bf16; MXU
    # accumulates in f32; epilogue stays f32 on the VPU.
    h = jnp.dot(x_ref[...], w0_ref[...], preferred_element_type=jnp.float32)
    h = jnp.maximum(h + b0_ref[...], 0.0)

    # Layer 1: relu(h @ W1 + b1).  Only the freshly produced (tm, D) activation
    # tile is cast in-kernel; the DxD weight is already bf16.
    h = jnp.dot(h.astype(jnp.bfloat16), w1_ref[...],
                preferred_element_type=jnp.float32)
    h = jnp.maximum(h + b1_ref[...], 0.0)

    # Layer 2: sigmoid(h @ w2 + b2), computed lane-dense in f32:
    #   logits(1, tm) = w2(1, D) . h(tm, D)^T
    logits = lax.dot_general(w2_ref[...], h, _TRANS_B_DIM_NUMBERS,
                             preferred_element_type=jnp.float32)
    logits = logits + b2_ref[...]
    probs = pl.reciprocal(1.0 + jnp.exp(-logits), approx=True)   # EUP slot
    o_ref[...] = probs[None].astype(o_ref.dtype)                 # (1, 1, tm)


# --------------------------------- wrapper ---------------------------------- #

def _round_up(n, m):
    return ((n + m - 1) // m) * m


def prior_discriminator_forward(params, x, *, block_rows=256):
    """Fused PriorDiscriminator forward.  x: (M, D) f32  ->  (M, 1) f32."""
    m, d = x.shape

    # Row-tile selection (perf review): large tiles so the MXU M-dim is fed and
    # the grid stays short.  Batches <= block_rows use a single full block
    # (grid=(1,)); on v7x that leaves one TC idle, which is accepted for tiny
    # batches.  Multiples of 16 keep bf16 sublane packing dense.
    if m <= block_rows:
        tm = _round_up(max(m, 1), 16)
    else:
        tm = block_rows                      # 256 (v6e/v7x); 128 also fine on v5e
    m_pad = _round_up(m, tm)
    n_blocks = m_pad // tm

    if m_pad != m:
        x = jnp.pad(x, ((0, m_pad - m), (0, 0)))

    # Pre-cast streamed/resident matmul operands to bf16 in the wrapper
    # (halves HBM traffic + VMEM residency; no per-step in-kernel weight casts).
    x_bf16 = x.astype(jnp.bfloat16)
    w0 = params["w0"].astype(jnp.bfloat16)
    w1 = params["w1"].astype(jnp.bfloat16)
    b0 = params["b0"].reshape(1, d).astype(jnp.float32)
    b1 = params["b1"].reshape(1, d).astype(jnp.float32)
    w2 = params["w2"].reshape(1, d).astype(jnp.float32)   # lane-dense row vector
    b2 = params["b2"].reshape(1, 1).astype(jnp.float32)

    out = pl.pallas_call(
        _prior_disc_kernel,
        out_shape=jax.ShapeDtypeStruct((n_blocks, 1, tm), jnp.float32),
        grid=(n_blocks,),
        in_specs=[
            pl.BlockSpec((tm, d), lambda i: (i, 0)),   # x rows (streamed, bf16)
            pl.BlockSpec((d, d), lambda i: (0, 0)),    # W0 (bf16, VMEM-resident)
            pl.BlockSpec((1, d), lambda i: (0, 0)),    # b0 (f32, lane-dense)
            pl.BlockSpec((d, d), lambda i: (0, 0)),    # W1 (bf16, VMEM-resident)
            pl.BlockSpec((1, d), lambda i: (0, 0)),    # b1 (f32, lane-dense)
            pl.BlockSpec((1, d), lambda i: (0, 0)),    # w2^T (f32, lane-dense)
            pl.BlockSpec((1, 1), lambda i: (0, 0)),    # b2 scalar
        ],
        out_specs=pl.BlockSpec((1, 1, tm), lambda i: (i, 0, 0)),
        compiler_params=pltpu.CompilerParams(
            dimension_semantics=("parallel",)),
    )(x_bf16, w0, b0, w1, b1, w2, b2)

    # (n_blocks, 1, tm) lane-dense slab  ->  (m, 1) column.
    return out.reshape(m_pad, 1)[:m]


# ------------------------- parameters & pure-JAX ref ------------------------ #

def init_linear(key, in_dim, out_dim):
    # PyTorch nn.Linear default init: U(-1/sqrt(fan_in), 1/sqrt(fan_in)).
    kw, kb = jax.random.split(key)
    bound = 1.0 / np.sqrt(in_dim)
    w = jax.random.uniform(kw, (in_dim, out_dim), jnp.float32, -bound, bound)
    b = jax.random.uniform(kb, (out_dim,), jnp.float32, -bound, bound)
    return w, b


def prior_discriminator_ref(params, x):
    # Pure-JAX reference using the same bf16-matmul / f32-accumulate recipe.
    bf = jnp.bfloat16
    h = jnp.maximum(
        jnp.dot(x.astype(bf), params["w0"].astype(bf),
                preferred_element_type=jnp.float32) + params["b0"], 0.0)
    h = jnp.maximum(
        jnp.dot(h.astype(bf), params["w1"].astype(bf),
                preferred_element_type=jnp.float32) + params["b1"], 0.0)
    logits = jnp.sum(h * params["w2"].reshape(1, -1), axis=-1,
                     keepdims=True) + params["b2"].reshape(1, 1)
    return 1.0 / (1.0 + jnp.exp(-logits))


# ----------------------------------- main ----------------------------------- #

if __name__ == "__main__":
    key = jax.random.PRNGKey(0)
    kx, k0, k1, k2 = jax.random.split(key, 4)

    batch, input_dim = 16, 128   # lane-dense: input_dim is a multiple of 128

    x = jax.random.normal(kx, (batch, input_dim), jnp.float32)
    w0, b0 = init_linear(k0, input_dim, input_dim)
    w1, b1 = init_linear(k1, input_dim, input_dim)
    w2, b2 = init_linear(k2, input_dim, 1)
    params = dict(w0=w0, b0=b0, w1=w1, b1=b1, w2=w2, b2=b2)

    out = jax.jit(prior_discriminator_forward)(params, x)
    jax.block_until_ready(out)

    assert out.shape == (batch, 1)
    ref = prior_discriminator_ref(params, x)
    np.testing.assert_allclose(np.asarray(out), np.asarray(ref),
                               rtol=2e-3, atol=2e-3)
    print("KERNEL_OK")
</pallas_src>

<mosaic_0001>
module attributes {stable_mosaic.version = 11 : i64} {
  func.func @_prior_disc_kernel(%arg0: i32, %arg1: memref<16x128xbf16, #tpu.memory_space<vmem>>, %arg2: memref<128x128xbf16, #tpu.memory_space<vmem>>, %arg3: memref<1x128xf32, #tpu.memory_space<vmem>>, %arg4: memref<128x128xbf16, #tpu.memory_space<vmem>>, %arg5: memref<1x128xf32, #tpu.memory_space<vmem>>, %arg6: memref<1x128xf32, #tpu.memory_space<vmem>>, %arg7: memref<1x1xf32, #tpu.memory_space<vmem>>, %arg8: memref<1x1x16xf32, #tpu.memory_space<vmem>>) attributes {dimension_semantics = [#tpu.dimension_semantics<parallel>], iteration_bounds = array<i64: 1>, scalar_prefetch = 0 : i64, scratch_operands = 0 : i64, tpu.core_type = #tpu.core_type<tc>, window_params = [{transform_indices = @transform_0, window_bounds = array<i64: 16, 128>}, {pipeline_mode = #tpu.pipeline_mode<synchronous>, transform_indices = @transform_1, window_bounds = array<i64: 128, 128>}, {pipeline_mode = #tpu.pipeline_mode<synchronous>, transform_indices = @transform_2, window_bounds = array<i64: 1, 128>}, {pipeline_mode = #tpu.pipeline_mode<synchronous>, transform_indices = @transform_3, window_bounds = array<i64: 128, 128>}, {pipeline_mode = #tpu.pipeline_mode<synchronous>, transform_indices = @transform_4, window_bounds = array<i64: 1, 128>}, {pipeline_mode = #tpu.pipeline_mode<synchronous>, transform_indices = @transform_5, window_bounds = array<i64: 1, 128>}, {pipeline_mode = #tpu.pipeline_mode<synchronous>, transform_indices = @transform_6, window_bounds = array<i64: 1, 1>}, {transform_indices = @transform_7, window_bounds = array<i64: 1, 1, 16>}]} {
    %c0 = arith.constant 0 : index
    %c0_0 = arith.constant 0 : index
    %0 = vector.load %arg1[%c0, %c0_0] : memref<16x128xbf16, #tpu.memory_space<vmem>>, vector<16x128xbf16>
    %c0_1 = arith.constant 0 : index
    %c0_2 = arith.constant 0 : index
    %1 = vector.load %arg2[%c0_1, %c0_2] : memref<128x128xbf16, #tpu.memory_space<vmem>>, vector<128x128xbf16>
    %cst = arith.constant dense<0.000000e+00> : vector<16x128xf32>
    %2 = tpu.matmul %0, %1, %cst {dimension_numbers = #tpu.dot_dimension_numbers<[1], [0], [0], [1], [0, 0, 1, 1], [], []>} : vector<16x128xbf16>, vector<128x128xbf16>, vector<16x128xf32> -> vector<16x128xf32>
    %c0_3 = arith.constant 0 : index
    %c0_4 = arith.constant 0 : index
    %3 = vector.load %arg3[%c0_3, %c0_4] : memref<1x128xf32, #tpu.memory_space<vmem>>, vector<1x128xf32>
    %4 = vector.broadcast %3 : vector<1x128xf32> to vector<16x128xf32>
    %5 = arith.addf %2, %4 : vector<16x128xf32>
    %cst_5 = arith.constant 0.000000e+00 : f32
    %6 = vector.broadcast %cst_5 : f32 to vector<16x128xf32>
    %7 = arith.maximumf %5, %6 : vector<16x128xf32>
    %8 = arith.truncf %7 : vector<16x128xf32> to vector<16x128xbf16>
    %c0_6 = arith.constant 0 : index
    %c0_7 = arith.constant 0 : index
    %9 = vector.load %arg4[%c0_6, %c0_7] : memref<128x128xbf16, #tpu.memory_space<vmem>>, vector<128x128xbf16>
    %cst_8 = arith.constant dense<0.000000e+00> : vector<16x128xf32>
    %10 = tpu.matmul %8, %9, %cst_8 {dimension_numbers = #tpu.dot_dimension_numbers<[1], [0], [0], [1], [0, 0, 1, 1], [], []>} : vector<16x128xbf16>, vector<128x128xbf16>, vector<16x128xf32> -> vector<16x128xf32>
    %c0_9 = arith.constant 0 : index
    %c0_10 = arith.constant 0 : index
    %11 = vector.load %arg5[%c0_9, %c0_10] : memref<1x128xf32, #tpu.memory_space<vmem>>, vector<1x128xf32>
    %12 = vector.broadcast %11 : vector<1x128xf32> to vector<16x128xf32>
    %13 = arith.addf %10, %12 : vector<16x128xf32>
    %cst_11 = arith.constant 0.000000e+00 : f32
    %14 = vector.broadcast %cst_11 : f32 to vector<16x128xf32>
    %15 = arith.maximumf %13, %14 : vector<16x128xf32>
    %c0_12 = arith.constant 0 : index
    %c0_13 = arith.constant 0 : index
    %16 = vector.load %arg6[%c0_12, %c0_13] : memref<1x128xf32, #tpu.memory_space<vmem>>, vector<1x128xf32>
    %cst_14 = arith.constant dense<0.000000e+00> : vector<1x16xf32>
    %17 = tpu.matmul %16, %15, %cst_14 {dimension_numbers = #tpu.dot_dimension_numbers<[1], [1], [0], [0], [0, 0, 1, 0], [], []>} : vector<1x128xf32>, vector<16x128xf32>, vector<1x16xf32> -> vector<1x16xf32>
    %c0_15 = arith.constant 0 : index
    %c0_16 = arith.constant 0 : index
    %18 = vector.load %arg7[%c0_15, %c0_16] : memref<1x1xf32, #tpu.memory_space<vmem>>, vector<1x1xf32>
    %19 = vector.broadcast %18 : vector<1x1xf32> to vector<1x16xf32>
    %20 = arith.addf %17, %19 : vector<1x16xf32>
    %cst_17 = arith.constant 0.000000e+00 : f32
    %21 = vector.broadcast %cst_17 : f32 to vector<1x16xf32>
    %22 = arith.subf %21, %20 : vector<1x16xf32>
    %23 = math.exp %22 : vector<1x16xf32>
    %cst_18 = arith.constant 1.000000e+00 : f32
    %24 = vector.broadcast %cst_18 : f32 to vector<1x16xf32>
    %25 = arith.addf %24, %23 : vector<1x16xf32>
    %26 = tpu.reciprocal %25 {approx = true} : vector<1x16xf32> -> vector<1x16xf32>
    %27 = vector.shape_cast %26 : vector<1x16xf32> to vector<1x1x16xf32>
    %c0_19 = arith.constant 0 : index
    %c0_20 = arith.constant 0 : index
    %c0_21 = arith.constant 0 : index
    %28 = vector.load %arg8[%c0_19, %c0_20, %c0_21] : memref<1x1x16xf32, #tpu.memory_space<vmem>>, vector<1x1x16xf32>
    tpu.vector_store %arg8[%c0_19, %c0_20, %c0_21], %27 {strides = array<i32>} : memref<1x1x16xf32, #tpu.memory_space<vmem>>, vector<1x1x16xf32>,
    return
  }
  func.func @transform_0(%arg0: i32) -> (i32, i32) {
    %c0_i32 = arith.constant 0 : i32
    %c0_i32_0 = arith.constant 0 : i32
    return %arg0, %c0_i32 : i32, i32
  }
  func.func @transform_1(%arg0: i32) -> (i32, i32) {
    %c0_i32 = arith.constant 0 : i32
    %c0_i32_0 = arith.constant 0 : i32
    %c0_i32_1 = arith.constant 0 : i32
    return %c0_i32, %c0_i32_0 : i32, i32
  }
  func.func @transform_2(%arg0: i32) -> (i32, i32) {
    %c0_i32 = arith.constant 0 : i32
    %c0_i32_0 = arith.constant 0 : i32
    %c0_i32_1 = arith.constant 0 : i32
    return %c0_i32, %c0_i32_0 : i32, i32
  }
  func.func @transform_3(%arg0: i32) -> (i32, i32) {
    %c0_i32 = arith.constant 0 : i32
    %c0_i32_0 = arith.constant 0 : i32
    %c0_i32_1 = arith.constant 0 : i32
    return %c0_i32, %c0_i32_0 : i32, i32
  }
  func.func @transform_4(%arg0: i32) -> (i32, i32) {
    %c0_i32 = arith.constant 0 : i32
    %c0_i32_0 = arith.constant 0 : i32
    %c0_i32_1 = arith.constant 0 : i32
    return %c0_i32, %c0_i32_0 : i32, i32
  }
  func.func @transform_5(%arg0: i32) -> (i32, i32) {
    %c0_i32 = arith.constant 0 : i32
    %c0_i32_0 = arith.constant 0 : i32
    %c0_i32_1 = arith.constant 0 : i32
    return %c0_i32, %c0_i32_0 : i32, i32
  }
  func.func @transform_6(%arg0: i32) -> (i32, i32) {
    %c0_i32 = arith.constant 0 : i32
    %c0_i32_0 = arith.constant 0 : i32
    %c0_i32_1 = arith.constant 0 : i32
    return %c0_i32, %c0_i32_0 : i32, i32
  }
  func.func @transform_7(%arg0: i32) -> (i32, i32, i32) {
    %c0_i32 = arith.constant 0 : i32
    %c0_i32_0 = arith.constant 0 : i32
    %c0_i32_1 = arith.constant 0 : i32
    return %arg0, %c0_i32, %c0_i32_0 : i32, i32, i32
  }
}

</mosaic_0001>

<llo_original>
// kernel: prior_discriminator_forward.1
$region0: #{prior_discriminator_forward.1}
  #allocation0 [shape = 'u32[]', space=smem, size = 0x4, offset = 0x4, fixed_abs, tag = 'smem constant byte address 0x4 - core index']
  #allocation1 [shape = 'u32[144,128]{1,0:T(1,128)}', space=vmem, size = 0x12000, scoped, tag = 'internal scratch']
  #allocation2 [shape = 'f32[1,1]{1,0:T(1,128)S(1)}', space=vmem, size = 0x200, scoped, tag = 'scoped memory for prior_discriminator_forward.1']
  %s0 = inlined_call_operand.vmem [shape: bf16[16,128], index: 0, kind: input, shape index: {}]
  %s1 = inlined_call_operand.vmem [shape: bf16[128,128], index: 1, kind: input, shape index: {}]
  %s2 = inlined_call_operand.vmem [shape: f32[1,128], index: 2, kind: input, shape index: {}]
  %s3 = inlined_call_operand.vmem [shape: bf16[128,128], index: 3, kind: input, shape index: {}]
  %s4 = inlined_call_operand.vmem [shape: f32[1,128], index: 4, kind: input, shape index: {}]
  %s5 = inlined_call_operand.vmem [shape: f32[1,128], index: 5, kind: input, shape index: {}]
  %s6 = inlined_call_operand.<no memory space> [shape: f32[1,1], index: 6, kind: input, shape index: {}]
  %s7 = inlined_call_operand.hbm [shape: f32[1,1,16], index: 7, kind: output, shape index: {}]
  %s8 = sld [smem:[#allocation0]]
  $region38: #{prior_discriminator_forward.1} parent=0
    _
  %s10 = ssub.s32 1, %s8
  %s11 = scalar_select 0, %s10, %s8
  %v12 = vstv %s6
  %13 = vst [vmem:[#allocation2] sm:$0x1] %v12
  $region1: #{prior_discriminator_forward.1} parent=0
    #allocation3 [shape = 'u8[512]{0}', space=vmem, size = 0x400, scoped, tag = 'output window, operand 0, single buffered']
    #allocation4 [shape = 's32[1]{0}', space=sflag, size = 0x4, scoped, tag = 'scoped memory for prior_discriminator_forward.1']
    %14 = vsyncpa [#allocation4], 0
    // Predicated region
    $region2: #{prior_discriminator_forward.1} parent=1 // pred_check
      _
    $region3: #{prior_discriminator_forward.1} parent=1 // pred_check_branch
      %16 = sbr.rel (0) target = $region5
    $region4: #{prior_discriminator_forward.1} parent=1 // pred_region
      _
    $region5: #{prior_discriminator_forward.1} parent=1 // pred_fallthru
      _
    // Predicated region
    $region6: #{prior_discriminator_forward.1} parent=1 // pred_check
      _
    $region7: #{prior_discriminator_forward.1} parent=1 // pred_check_branch
      %18 = sbr.rel (0) target = $region9
    $region8: #{prior_discriminator_forward.1} parent=1 // pred_region
      _
    $region9: #{prior_discriminator_forward.1} parent=1 // pred_fallthru
      _
    // Predicated region
    $region10: #{prior_discriminator_forward.1} parent=1 // pred_check
      _
    $region11: #{prior_discriminator_forward.1} parent=1 // pred_check_branch
      %20 = sbr.rel (0) target = $region13
    $region12: #{prior_discriminator_forward.1} parent=1 // pred_region
      _
    $region13: #{prior_discriminator_forward.1} parent=1 // pred_fallthru
      _
    // Predicated region
    $region14: #{prior_discriminator_forward.1} parent=1 // pred_check
      _
    $region15: #{prior_discriminator_forward.1} parent=1 // pred_check_branch
      %22 = sbr.rel (0) target = $region17
    $region16: #{prior_discriminator_forward.1} parent=1 // pred_region
      _
    $region17: #{prior_discriminator_forward.1} parent=1 // pred_fallthru
      _
    // Predicated region
    $region18: #{prior_discriminator_forward.1} parent=1 // pred_check
      _
    $region19: #{prior_discriminator_forward.1} parent=1 // pred_check_branch
      %24 = sbr.rel (0) target = $region21
    $region20: #{prior_discriminator_forward.1} parent=1 // pred_region
      _
    $region21: #{prior_discriminator_forward.1} parent=1 // pred_fallthru
      _
    // Predicated region
    $region22: #{prior_discriminator_forward.1} parent=1 // pred_check
      _
    $region23: #{prior_discriminator_forward.1} parent=1 // pred_check_branch
      %26 = sbr.rel (0) target = $region25
    $region24: #{prior_discriminator_forward.1} parent=1 // pred_region
      _
    $region25: #{prior_discriminator_forward.1} parent=1 // pred_fallthru
      _
    // Predicated region
    $region26: #{prior_discriminator_forward.1} parent=1 // pred_check
      _
    $region27: #{prior_discriminator_forward.1} parent=1 // pred_check_branch
      %28 = sbr.rel (0) target = $region29
    $region28: #{prior_discriminator_forward.1} parent=1 // pred_region
      _
    $region29: #{prior_discriminator_forward.1} parent=1 // pred_fallthru
      _
    %v30 = vld [vmem:[%s0] sm:$0xf]
    %v31 = vld [vmem:[%s0 + $0x4] sm:$0xf]
    %v32 = vld [vmem:[%s1] sm:$0xf]
    %v33 = vld [vmem:[%s1 + $0x4] sm:$0xf]
    %v34 = vld [vmem:[%s1 + $0x8] sm:$0xf]
    %v35 = vld [vmem:[%s1 + $0xc] sm:$0xf]
    %v36 = vld [vmem:[%s1 + $0x10] sm:$0xf]
    %v37 = vld [vmem:[%s1 + $0x14] sm:$0xf]
    %v38 = vld [vmem:[%s1 + $0x18] sm:$0xf]
    %v39 = vld [vmem:[%s1 + $0x1c] sm:$0xf]
    %v40 = vld [vmem:[%s1 + $0x20] sm:$0xf]
    %v41 = vld [vmem:[%s1 + $0x24] sm:$0xf]
    %v42 = vld [vmem:[%s1 + $0x28] sm:$0xf]
    %v43 = vld [vmem:[%s1 + $0x2c] sm:$0xf]
    %v44 = vld [vmem:[%s1 + $0x30] sm:$0xf]
    %v45 = vld [vmem:[%s1 + $0x34] sm:$0xf]
    %v46 = vld [vmem:[%s1 + $0x38] sm:$0xf]
    %v47 = vld [vmem:[%s1 + $0x3c] sm:$0xf]
    %v48 = vld [vmem:[%s2] sm:$0x1]
    %v50 = vlaneseq
    %v51 = vshrl.u32 %v50, 7
    %v52 = vsub.s32 0, %v51
    %v53 = vrot.slane %v48, %v52
    %v57 = vunpack.c.l.b16 %v30
    %v58 = vunpack.c.l.b16 %v31
    %v59 = vpack.c.b16 %v58, %v57
    %v77 = vunpack.c.l.b16 %v32
    %v78 = vunpack.c.l.b16 %v33
    %v79 = vunpack.c.l.b16 %v34
    %v80 = vunpack.c.l.b16 %v35
    %v81 = vunpack.c.l.b16 %v36
    %v82 = vunpack.c.l.b16 %v37
    %v83 = vunpack.c.l.b16 %v38
    %v84 = vunpack.c.l.b16 %v39
    %v85 = vunpack.c.l.b16 %v40
    %v86 = vunpack.c.l.b16 %v41
    %v87 = vunpack.c.l.b16 %v42
    %v88 = vunpack.c.l.b16 %v43
    %v89 = vunpack.c.l.b16 %v44
    %v90 = vunpack.c.l.b16 %v45
    %v91 = vunpack.c.l.b16 %v46
    %v92 = vunpack.c.l.b16 %v47
    %v93 = vpack.c.b16 %v78, %v77
    %v94 = vpack.c.b16 %v80, %v79
    %v95 = vpack.c.b16 %v82, %v81
    %v96 = vpack.c.b16 %v84, %v83
    %v97 = vpack.c.b16 %v86, %v85
    %v98 = vpack.c.b16 %v88, %v87
    %v99 = vpack.c.b16 %v90, %v89
    %v100 = vpack.c.b16 %v92, %v91
    %109 = vmatprep.subr.bf16.mxu0 0
    %110 = vmatpush1.bf16.msra.mxu0 %v93
    %111 = vmatprep.subr.bf16.mxu0 0
    %112 = vmatpush1.bf16.msra.mxu0 %v94
    %113 = vmatprep.subr.bf16.mxu0 0
    %114 = vmatpush1.bf16.msra.mxu0 %v95
    %115 = vmatprep.subr.bf16.mxu0 0
    %116 = vmatpush1.bf16.msra.mxu0 %v96
    %117 = vmatprep.subr.bf16.mxu0 0
    %118 = vmatpush1.bf16.msra.mxu0 %v97
    %119 = vmatprep.subr.bf16.mxu0 0
    %120 = vmatpush1.bf16.msra.mxu0 %v98
    %121 = vmatprep.subr.bf16.mxu0 0
    %122 = vmatpush1.bf16.msra.mxu0 %v99
    %123 = vmatprep.subr.bf16.mxu0 0
    %124 = vmatpush1.bf16.msra.mxu0 %v100
    %125 = vmatprep.subr.bf16.mxu0 0
    %126 = vmatpush1.bf16.msra.mxu0 0
    %127 = vmatprep.subr.bf16.mxu0 0
    %128 = vmatpush1.bf16.msra.mxu0 0
    %129 = vmatprep.subr.bf16.mxu0 0
    %130 = vmatpush1.bf16.msra.mxu0 0
    %131 = vmatprep.subr.bf16.mxu0 0
    %132 = vmatpush1.bf16.msra.mxu0 0
    %133 = vmatprep.subr.bf16.mxu0 0
    %134 = vmatpush1.bf16.msra.mxu0 0
    %135 = vmatprep.subr.bf16.mxu0 0
    %136 = vmatpush1.bf16.msra.mxu0 0
    %137 = vmatprep.subr.bf16.mxu0 0
    %138 = vmatpush1.bf16.msra.mxu0 0
    %139 = vmatprep.subr.bf16.mxu0 0
    %140 = vmatpush1.bf16.msra.mxu0 0
    %141 = vmatprep.mubr.bf16.mxu0 0
    %142 = vmatmul.mubr.bf16.gmra.mrb[0].mxu0 %v59
    %v143 = vpop.f32.mrb[0].mxu0
    %v144 = vadd.f32 %v53, %v143
    %v145 = vpop.f32.mrb[0].mxu0
    %v146 = vpop.f32.mrb[0].mxu0
    %v147 = vadd.f32 %v53, %v146
    %v148 = vpop.f32.mrb[0].mxu0
    %149 = vdwg.mxu0
    %v150 = vmax.f32 %v144, 0.0
    %v151 = vmax.f32 %v147, 0.0
    %v152 = vpack.c.bf16 %v151, %v150
    %v153 = vld [vmem:[%s3] sm:$0xf]
    %v154 = vld [vmem:[%s3 + $0x4] sm:$0xf]
    %v155 = vld [vmem:[%s3 + $0x8] sm:$0xf]
    %v156 = vld [vmem:[%s3 + $0xc] sm:$0xf]
    %v157 = vld [vmem:[%s3 + $0x10] sm:$0xf]
    %v158 = vld [vmem:[%s3 + $0x14] sm:$0xf]
    %v159 = vld [vmem:[%s3 + $0x18] sm:$0xf]
    %v160 = vld [vmem:[%s3 + $0x1c] sm:$0xf]
    %v161 = vld [vmem:[%s3 + $0x20] sm:$0xf]
    %v162 = vld [vmem:[%s3 + $0x24] sm:$0xf]
    %v163 = vld [vmem:[%s3 + $0x28] sm:$0xf]
    %v164 = vld [vmem:[%s3 + $0x2c] sm:$0xf]
    %v165 = vld [vmem:[%s3 + $0x30] sm:$0xf]
    %v166 = vld [vmem:[%s3 + $0x34] sm:$0xf]
    %v167 = vld [vmem:[%s3 + $0x38] sm:$0xf]
    %v168 = vld [vmem:[%s3 + $0x3c] sm:$0xf]
    %v169 = vld [vmem:[%s4] sm:$0x1]
    %v171 = vlaneseq
    %v172 = vshrl.u32 %v171, 7
    %v173 = vsub.s32 0, %v172
    %v174 = vrot.slane %v169, %v173
    %v192 = vunpack.c.l.b16 %v153
    %v193 = vunpack.c.l.b16 %v154
    %v194 = vunpack.c.l.b16 %v155
    %v195 = vunpack.c.l.b16 %v156
    %v196 = vunpack.c.l.b16 %v157
    %v197 = vunpack.c.l.b16 %v158
    %v198 = vunpack.c.l.b16 %v159
    %v199 = vunpack.c.l.b16 %v160
    %v200 = vunpack.c.l.b16 %v161
    %v201 = vunpack.c.l.b16 %v162
    %v202 = vunpack.c.l.b16 %v163
    %v203 = vunpack.c.l.b16 %v164
    %v204 = vunpack.c.l.b16 %v165
    %v205 = vunpack.c.l.b16 %v166
    %v206 = vunpack.c.l.b16 %v167
    %v207 = vunpack.c.l.b16 %v168
    %v208 = vpack.c.b16 %v193, %v192
    %v209 = vpack.c.b16 %v195, %v194
    %v210 = vpack.c.b16 %v197, %v196
    %v211 = vpack.c.b16 %v199, %v198
    %v212 = vpack.c.b16 %v201, %v200
    %v213 = vpack.c.b16 %v203, %v202
    %v214 = vpack.c.b16 %v205, %v204
    %v215 = vpack.c.b16 %v207, %v206
    %224 = vmatprep.subr.bf16.mxu0 0
    %225 = vmatpush1.bf16.msra.mxu0 %v208
    %226 = vmatprep.subr.bf16.mxu0 0
    %227 = vmatpush1.bf16.msra.mxu0 %v209
    %228 = vmatprep.subr.bf16.mxu0 0
    %229 = vmatpush1.bf16.msra.mxu0 %v210
    %230 = vmatprep.subr.bf16.mxu0 0
    %231 = vmatpush1.bf16.msra.mxu0 %v211
    %232 = vmatprep.subr.bf16.mxu0 0
    %233 = vmatpush1.bf16.msra.mxu0 %v212
    %234 = vmatprep.subr.bf16.mxu0 0
    %235 = vmatpush1.bf16.msra.mxu0 %v213
    %236 = vmatprep.subr.bf16.mxu0 0
    %237 = vmatpush1.bf16.msra.mxu0 %v214
    %238 = vmatprep.subr.bf16.mxu0 0
    %239 = vmatpush1.bf16.msra.mxu0 %v215
    %240 = vmatprep.subr.bf16.mxu0 0
    %241 = vmatpush1.bf16.msra.mxu0 0
    %242 = vmatprep.subr.bf16.mxu0 0
    %243 = vmatpush1.bf16.msra.mxu0 0
    %244 = vmatprep.subr.bf16.mxu0 0
    %245 = vmatpush1.bf16.msra.mxu0 0
    %246 = vmatprep.subr.bf16.mxu0 0
    %247 = vmatpush1.bf16.msra.mxu0 0
    %248 = vmatprep.subr.bf16.mxu0 0
    %249 = vmatpush1.bf16.msra.mxu0 0
    %250 = vmatprep.subr.bf16.mxu0 0
    %251 = vmatpush1.bf16.msra.mxu0 0
    %252 = vmatprep.subr.bf16.mxu0 0
    %253 = vmatpush1.bf16.msra.mxu0 0
    %254 = vmatprep.subr.bf16.mxu0 0
    %255 = vmatpush1.bf16.msra.mxu0 0
    %256 = vmatprep.mubr.bf16.mxu0 0
    %257 = vmatmul.mubr.bf16.gmra.mrb[0].mxu0 %v152
    %v258 = vpop.f32.mrb[0].mxu0
    %v259 = vadd.f32 %v174, %v258
    %v260 = vpop.f32.mrb[0].mxu0
    %v261 = vpop.f32.mrb[0].mxu0
    %v262 = vadd.f32 %v174, %v261
    %v263 = vpop.f32.mrb[0].mxu0
    %264 = vdwg.mxu0
    %v265 = vmax.f32 %v259, 0.0
    %v266 = vmax.f32 %v262, 0.0
    %v267 = vld [vmem:[%s5] sm:$0x1]
    %v268 = vld [vmem:[#allocation2] sm:$0x1]
    %270 = vset.pattern.permute.xlu0 0
    %271 = vperm.xlu0 %270, %v268
    %v272 = vpop.permute.xlu0 %271
    %v274 = vlaneseq
    %v275 = vshrl.u32 %v274, 7
    %v276 = vsub.s32 0, %v275
    %v277 = vrot.slane %v272, %v276
    %278 = vmatprep.subr.mxu0 0.0
    %279 = vmatpush1.xpose.msra.mxu0 %v265
    %280 = vmatprep.subr.mxu0 0.0
    %281 = vmatpush1.xpose.msra.mxu0 %v266
    %282 = vmatprep.subr.mxu0 0.0
    %283 = vmatpush1.xpose.msra.mxu0 0.0
    %284 = vmatprep.subr.mxu0 0.0
    %285 = vmatpush1.xpose.msra.mxu0 0.0
    %286 = vmatprep.subr.mxu0 0.0
    %287 = vmatpush1.xpose.msra.mxu0 0.0
    %288 = vmatprep.subr.mxu0 0.0
    %289 = vmatpush1.xpose.msra.mxu0 0.0
    %290 = vmatprep.subr.mxu0 0.0
    %291 = vmatpush1.xpose.msra.mxu0 0.0
    %292 = vmatprep.subr.mxu0 0.0
    %293 = vmatpush1.xpose.msra.mxu0 0.0
    %294 = vmatprep.subr.mxu0 0.0
    %295 = vmatpush1.xpose.msra.mxu0 0.0
    %296 = vmatprep.subr.mxu0 0.0
    %297 = vmatpush1.xpose.msra.mxu0 0.0
    %298 = vmatprep.subr.mxu0 0.0
    %299 = vmatpush1.xpose.msra.mxu0 0.0
    %300 = vmatprep.subr.mxu0 0.0
    %301 = vmatpush1.xpose.msra.mxu0 0.0
    %302 = vmatprep.subr.mxu0 0.0
    %303 = vmatpush1.xpose.msra.mxu0 0.0
    %304 = vmatprep.subr.mxu0 0.0
    %305 = vmatpush1.xpose.msra.mxu0 0.0
    %306 = vmatprep.subr.mxu0 0.0
    %307 = vmatpush1.xpose.msra.mxu0 0.0
    %308 = vmatprep.subr.mxu0 0.0
    %309 = vmatpush1.xpose.msra.mxu0 0.0
    %310 = vmatprep.subr.mxu0 0.0
    %311 = vmatpush1.xpose.msra.mxu0 0.0
    %312 = vmatprep.subr.mxu0 0.0
    %313 = vmatpush1.xpose.msra.mxu0 0.0
    %314 = vmatprep.subr.mxu0 0.0
    %315 = vmatpush1.xpose.msra.mxu0 0.0
    %316 = vmatprep.subr.mxu0 0.0
    %317 = vmatpush1.xpose.msra.mxu0 0.0
    %318 = vmatprep.subr.mxu0 0.0
    %319 = vmatpush1.xpose.msra.mxu0 0.0
    %320 = vmatprep.subr.mxu0 0.0
    %321 = vmatpush1.xpose.msra.mxu0 0.0
    %322 = vmatprep.subr.mxu0 0.0
    %323 = vmatpush1.xpose.msra.mxu0 0.0
    %324 = vmatprep.subr.mxu0 0.0
    %325 = vmatpush1.xpose.msra.mxu0 0.0
    %326 = vmatprep.subr.mxu0 0.0
    %327 = vmatpush1.xpose.msra.mxu0 0.0
    %328 = vmatprep.subr.mxu0 0.0
    %329 = vmatpush1.xpose.msra.mxu0 0.0
    %330 = vmatprep.subr.mxu0 0.0
    %331 = vmatpush1.xpose.msra.mxu0 0.0
    %332 = vmatprep.subr.mxu0 0.0
    %333 = vmatpush1.xpose.msra.mxu0 0.0
    %334 = vmatprep.subr.mxu0 0.0
    %335 = vmatpush1.xpose.msra.mxu0 0.0
    %336 = vmatprep.subr.mxu0 0.0
    %337 = vmatpush1.xpose.msra.mxu0 0.0
    %338 = vmatprep.subr.mxu0 0.0
    %339 = vmatpush1.xpose.msra.mxu0 0.0
    %340 = vmatprep.subr.mxu0 0.0
    %341 = vmatpush1.xpose.msra.mxu0 0.0
    %342 = vmatprep.mubr.f32.mxu0 0.0
    %343 = vmatmul.mubr.f32.gmra.mrb[0].mxu0 %v267
    %v344 = vpop.f32.mrb[0].mxu0
    %v345 = vadd.f32 %v277, %v344
    %v346 = vpop.f32.mrb[0].mxu0
    %347 = vdwg.mxu0
    %v348 = vsub.f32 0.0, %v345
    %v349 = vmul.f32 %v348, 1.442695
    %v350 = vpow.pop %v349
    %v351 = vadd.f32 %v350, 1.0
    %v352 = vrcp.pop %v351
    %vm353 = vcmask 122880
    %354 = vst.msk [vmem:[#allocation3] sm:$0x1] %vm353, %v352
    // Predicated region
    $region30: #{prior_discriminator_forward.1} parent=1 // pred_check
      _
    $region31: #{prior_discriminator_forward.1} parent=1 // pred_check_branch
      %356 = sbr.rel (0) target = $region33
    $region32: #{prior_discriminator_forward.1} parent=1 // pred_region
      %s358 = ssub.s32 16, 16
      %359 = vsyncadd [#allocation4], %s358
      %s361 = sshll.u32 [#allocation3], 4
      %s362 = int_to_ptr.vmem [resolvable:$true] %s361
      %364 = dma.vmem_to_hbm [thread:$0]  %s362, 16, %s7, [#allocation4]
    $region33: #{prior_discriminator_forward.1} parent=1 // pred_fallthru
      _
    // Predicated region
    $region34: #{prior_discriminator_forward.1} parent=1 // pred_check
      _
    $region35: #{prior_discriminator_forward.1} parent=1 // pred_check_branch
      %366 = sbr.rel (0) target = $region37
    $region36: #{prior_discriminator_forward.1} parent=1 // pred_region
      %367 = dma.done [#allocation4], 16
    $region37: #{prior_discriminator_forward.1} parent=1 // pred_fallthru
      _
    %368 = vsyncpa [#allocation4], 1

</llo_original>
